<compile_context>
chip_gen: v6e
topology: v6e:2x2x1
jax: 0.10.0
libtpu: 0.0.40
codegen_flags: <defaults>
</compile_context>

<pallas_src>
import math

import jax
import jax.numpy as jnp
from jax.experimental import pallas as pl
from jax.experimental.pallas import tpu as pltpu

_LANE = 512             # lane-dense last dim (multiple of 128)
_MAX_BLOCK_ROWS = 1024  # 1024 x 512 x 4B = 2 MiB per buffer, x4 pipeline bufs = 8 MiB


def _neighbor_norm_kernel(inv_ref, x_ref, o_ref):
    # inv_ref: (1,) float32 scalar prefetch in SMEM holding 1 / n_neighbors.
    # x_ref / o_ref: (block_rows, _LANE) VMEM tiles in the input's native dtype.
    x = x_ref[...]
    o_ref[...] = x * inv_ref[0].astype(x.dtype)


def _round_up(x: int, m: int) -> int:
    return -(-x // m) * m


def neighbor_norm(input_features: jax.Array, n_neighbors) -> jax.Array:
    """Divide input features by the (dynamic) number of neighbors."""
    orig_shape = input_features.shape
    dtype = input_features.dtype
    total = math.prod(orig_shape)
    if total == 0:
        return input_features

    # 1/n as a float32 scalar-prefetch value (works for python ints or arrays).
    inv = (jnp.float32(1.0) / jnp.asarray(n_neighbors, jnp.float32)).reshape(1)

    # Flatten to a lane-dense 2D slab (rows, _LANE). Pad the tail so the block
    # shape satisfies the (8, 128) rule and evenly divides the grid.
    rows = -(-total // _LANE)
    block_rows = min(_MAX_BLOCK_ROWS, _round_up(max(rows, 8), 8))
    padded_rows = _round_up(rows, block_rows)
    padded_total = padded_rows * _LANE

    flat = input_features.reshape(-1)
    if padded_total != total:
        flat = jnp.pad(flat, (0, padded_total - total))
    x2d = flat.reshape(padded_rows, _LANE)

    grid = (padded_rows // block_rows,)

    grid_spec = pltpu.PrefetchScalarGridSpec(
        num_scalar_prefetch=1,
        grid=grid,
        in_specs=[pl.BlockSpec((block_rows, _LANE), lambda r, inv_ref: (r, 0))],
        out_specs=pl.BlockSpec((block_rows, _LANE), lambda r, inv_ref: (r, 0)),
    )

    out2d = pl.pallas_call(
        _neighbor_norm_kernel,
        out_shape=jax.ShapeDtypeStruct((padded_rows, _LANE), dtype),
        grid_spec=grid_spec,
        compiler_params=pltpu.CompilerParams(
            # Row-grid axis shards across the two TensorCores on v7x.
            dimension_semantics=("parallel",),
        ),
    )(inv, x2d)

    out_flat = out2d.reshape(-1)
    if padded_total != total:
        out_flat = out_flat[:total]
    return out_flat.reshape(orig_shape)


if __name__ == "__main__":
    key = jax.random.PRNGKey(0)
    n_frames, n_beads, n_feats = 2, 8, 32
    x = jax.random.normal(key, (n_frames, n_beads, n_feats), dtype=jnp.float32)
    n_neighbors = 5

    out = neighbor_norm(x, n_neighbors)
    out = jax.block_until_ready(out)

    ref = x / n_neighbors
    assert out.shape == x.shape and out.dtype == x.dtype
    assert jnp.allclose(out, ref, rtol=1e-5, atol=1e-6)
    print("KERNEL_OK")
</pallas_src>

<mosaic_0001>
module attributes {stable_mosaic.version = 11 : i64} {
  func.func @_neighbor_norm_kernel(%arg0: i32, %arg1: memref<1xf32, #tpu.memory_space<smem>>, %arg2: memref<8x512xf32, #tpu.memory_space<vmem>>, %arg3: memref<8x512xf32, #tpu.memory_space<vmem>>) attributes {dimension_semantics = [#tpu.dimension_semantics<parallel>], iteration_bounds = array<i64: 1>, scalar_prefetch = 1 : i64, scratch_operands = 0 : i64, tpu.core_type = #tpu.core_type<tc>, window_params = [{transform_indices = @transform_0, window_bounds = array<i64: 8, 512>}, {transform_indices = @transform_1, window_bounds = array<i64: 8, 512>}]} {
    %c0 = arith.constant 0 : index
    %c0_0 = arith.constant 0 : index
    %0 = vector.load %arg2[%c0, %c0_0] : memref<8x512xf32, #tpu.memory_space<vmem>>, vector<8x512xf32>
    %c0_1 = arith.constant 0 : index
    %1 = memref.load %arg1[%c0_1] : memref<1xf32, #tpu.memory_space<smem>>
    %2 = vector.broadcast %1 : f32 to vector<8x512xf32>
    %3 = arith.mulf %0, %2 : vector<8x512xf32>
    %c0_2 = arith.constant 0 : index
    %c0_3 = arith.constant 0 : index
    %4 = vector.load %arg3[%c0_2, %c0_3] : memref<8x512xf32, #tpu.memory_space<vmem>>, vector<8x512xf32>
    tpu.vector_store %arg3[%c0_2, %c0_3], %3 {strides = array<i32>} : memref<8x512xf32, #tpu.memory_space<vmem>>, vector<8x512xf32>,
    return
  }
  func.func @transform_0(%arg0: i32, %arg1: memref<1xf32, #tpu.memory_space<smem>>) -> (i32, i32) {
    %c0_i32 = arith.constant 0 : i32
    %c0_i32_0 = arith.constant 0 : i32
    return %arg0, %c0_i32 : i32, i32
  }
  func.func @transform_1(%arg0: i32, %arg1: memref<1xf32, #tpu.memory_space<smem>>) -> (i32, i32) {
    %c0_i32 = arith.constant 0 : i32
    %c0_i32_0 = arith.constant 0 : i32
    return %arg0, %c0_i32 : i32, i32
  }
}

</mosaic_0001>

<llo_original>
// kernel: tpu_custom_call.1
$region0: #{tpu_custom_call.1}
  #allocation0 [shape = 'u32[]', space=smem, size = 0x4, offset = 0x4, fixed_abs, tag = 'smem constant byte address 0x4 - core index']
  #allocation1 [shape = 'u32[144,128]{1,0:T(1,128)}', space=vmem, size = 0x12000, scoped, tag = 'internal scratch']
  #allocation2 [shape = 's32[1]{0}', space=sflag, size = 0x4, scoped, tag = 'scoped memory for tpu_custom_call.1']
  #allocation3 [shape = 'f32[1]{0:T(128)S(6)}', space=smem, size = 0x200, scoped, tag = 'prefetched SMEM operand 0']
  %s0 = inlined_call_operand.<no memory space> [shape: f32[1], index: 0, kind: input, shape index: {}]
  %s1 = inlined_call_operand.hbm [shape: f32[8,512], index: 1, kind: input, shape index: {}]
  %s2 = inlined_call_operand.hbm [shape: f32[8,512], index: 2, kind: output, shape index: {}]
  %s3 = sld [smem:[#allocation0]]
  $region18: #{tpu_custom_call.1} parent=0
    _
  %s5 = ssub.s32 1, %s3
  %s6 = scalar_select 0, %s5, %s3
  %7 = sst [smem:[#allocation3]] %s0
  $region1: #{tpu_custom_call.1} parent=0
    #allocation4 [shape = 'u8[16384]{0}', space=vmem, size = 0x4000, scoped, tag = 'input window, operand 1, single buffered']
    #allocation5 [shape = 's32[1]{0}', space=sflag, size = 0x4, scoped, tag = 'scoped memory for tpu_custom_call.1']
    #allocation6 [shape = 's32[1]{0}', space=sflag, size = 0x4, scoped, tag = 'scoped memory for tpu_custom_call.1']
    #allocation7 [shape = 'u8[16384]{0}', space=vmem, size = 0x4000, scoped, tag = 'output window, operand 0, single buffered']
    %8 = vsyncpa [#allocation5], 0
    %9 = vsyncpa [#allocation6], 0
    // Predicated region
    $region2: #{tpu_custom_call.1} parent=1 // pred_check
      _
    $region3: #{tpu_custom_call.1} parent=1 // pred_check_branch
      %11 = sbr.rel (0) target = $region5
    $region4: #{tpu_custom_call.1} parent=1 // pred_region
      %s13 = ssub.s32 512, 512
      %14 = vsyncadd [#allocation5], %s13
      %s16 = sshll.u32 [#allocation4], 4
      %s17 = int_to_ptr.vmem [resolvable:$true] %s16
      %19 = dma.hbm_to_vmem [thread:$0]  %s1, 512, %s17, [#allocation5]
    $region5: #{tpu_custom_call.1} parent=1 // pred_fallthru
      _
    // Predicated region
    $region6: #{tpu_custom_call.1} parent=1 // pred_check
      _
    $region7: #{tpu_custom_call.1} parent=1 // pred_check_branch
      %21 = sbr.rel (0) target = $region9
    $region8: #{tpu_custom_call.1} parent=1 // pred_region
      %22 = dma.done [#allocation5], 512
    $region9: #{tpu_custom_call.1} parent=1 // pred_fallthru
      _
    %v23 = vld [vmem:[#allocation4] sm:$0xff]
    %v24 = vld [vmem:[#allocation4 + $0x8] sm:$0xff]
    %v25 = vld [vmem:[#allocation4 + $0x10] sm:$0xff]
    %v26 = vld [vmem:[#allocation4 + $0x18] sm:$0xff]
    %s27 = sld [smem:[#allocation3]]
    %v28 = vstv %s27
    %v29 = vmul.f32 %v23, %v28
    %v30 = vmul.f32 %v24, %v28
    %v31 = vmul.f32 %v25, %v28
    %v32 = vmul.f32 %v26, %v28
    %33 = vst [vmem:[#allocation7] sm:$0xff] %v29
    %34 = vst [vmem:[#allocation7 + $0x8] sm:$0xff] %v30
    %35 = vst [vmem:[#allocation7 + $0x10] sm:$0xff] %v31
    %36 = vst [vmem:[#allocation7 + $0x18] sm:$0xff] %v32
    // Predicated region
    $region10: #{tpu_custom_call.1} parent=1 // pred_check
      _
    $region11: #{tpu_custom_call.1} parent=1 // pred_check_branch
      %38 = sbr.rel (0) target = $region13
    $region12: #{tpu_custom_call.1} parent=1 // pred_region
      %s40 = ssub.s32 512, 512
      %41 = vsyncadd [#allocation6], %s40
      %s43 = sshll.u32 [#allocation7], 4
      %s44 = int_to_ptr.vmem [resolvable:$true] %s43
      %46 = dma.vmem_to_hbm [thread:$0]  %s44, 512, %s2, [#allocation6]
    $region13: #{tpu_custom_call.1} parent=1 // pred_fallthru
      _
    // Predicated region
    $region14: #{tpu_custom_call.1} parent=1 // pred_check
      _
    $region15: #{tpu_custom_call.1} parent=1 // pred_check_branch
      %48 = sbr.rel (0) target = $region17
    $region16: #{tpu_custom_call.1} parent=1 // pred_region
      %49 = dma.done [#allocation6], 512
    $region17: #{tpu_custom_call.1} parent=1 // pred_fallthru
      _
    %50 = vsyncpa [#allocation5], 1
    %51 = vsyncpa [#allocation6], 1

</llo_original>
